<compile_context>
chip_gen: v6e
topology: v6e:2x2x1
jax: 0.10.0
libtpu: 0.0.40
codegen_flags: <defaults>
</compile_context>

<pallas_src>
import functools

import jax
import jax.numpy as jnp
from jax import lax
from jax.experimental import pallas as pl
from jax.experimental.pallas import tpu as pltpu


# ---------------------------------------------------------------------------
# Hardware queries (generation-aware block sizing)
# ---------------------------------------------------------------------------
def _vmem_capacity_bytes():
    """Physical VMEM per TensorCore; conservative (v7x) fallback if unknown."""
    try:
        return int(pltpu.get_tpu_info().vmem_capacity_bytes)
    except Exception:
        return 64 << 20


def _num_tensorcores():
    """2 TensorCores per chip on v7x, 1 on v5e/v6e."""
    try:
        kind = jax.devices()[0].device_kind.lower()
    except Exception:
        return 1
    return 2 if "v7" in kind else 1


def _pick_blocks(B, N, c_in, c_out, itemsize):
    """Choose (bb, tn): batch elements and lanes per grid step.

    The kernel is purely HBM-bandwidth bound (AI ~1.3 flop/byte), so the goal
    is multi-MiB blocks while keeping the double-buffered in+out footprint
    well inside VMEM on every generation.
    """
    vmem_cap = _vmem_capacity_bytes()
    # in+out bytes of ONE grid step; Pallas double-buffers both -> ~3x headroom.
    max_block_bytes = vmem_cap // 6
    per_pixel = (c_in + c_out) * itemsize            # bytes per (batch, lane)

    if per_pixel * N <= max_block_bytes:
        tn = N                                       # whole spatial extent
        bb = int(min(B, max(1, max_block_bytes // (per_pixel * N)), 256))
    else:
        bb = 1                                       # tile the large spatial axis
        tn = int(min(N, max(128, (max_block_bytes // per_pixel) // 128 * 128)))

    # v7x only: give both TensorCores work, but never shrink a block below
    # ~1 MiB to do it.  Single-TC chips keep the largest possible block.
    n_tc = _num_tensorcores()
    while (n_tc > 1 and bb > 1
           and pl.cdiv(B, bb) * pl.cdiv(N, tn) < n_tc
           and pl.cdiv(bb, 2) * per_pixel * tn >= (1 << 20)):
        bb = pl.cdiv(bb, 2)

    vmem_limit = int(min(vmem_cap * 3 // 4, 128 << 20))
    return bb, tn, vmem_limit


# ---------------------------------------------------------------------------
# Kernels
# ---------------------------------------------------------------------------
def _conv1x1_kernel(x_ref, w_ref, b_ref, o_ref, *, bb):
    # x_ref: (bb, c_in, tn)   spatial (H*W) flattened onto lanes, native dtype
    # w_ref: (c_out, c_in)    1x1 conv weight (f32)
    # b_ref: (c_out, 1)       bias (f32)
    # o_ref: (bb, c_out, tn)  output in the input dtype
    w = w_ref[...]
    c_out, tn = o_ref.shape[1], o_ref.shape[2]
    # Hoist the lane broadcast of the bias out of the per-batch loop
    # (JAX does not CSE broadcast_in_dim).
    b_row = jnp.broadcast_to(b_ref[...], (c_out, tn))

    def body(i, carry):
        xi = x_ref[i].astype(jnp.float32)            # cast in-kernel, not in HBM
        y = jnp.dot(w, xi, preferred_element_type=jnp.float32) + b_row
        o_ref[i] = y.astype(o_ref.dtype)
        return carry

    lax.fori_loop(0, bb, body, 0, unroll=min(bb, 4))


def _pad_kernel(x_ref, o_ref, *, c_in):
    # Zero-pad the channel axis: out[:, :c_in, :] = x ; out[:, c_in:, :] = 0
    bb, c_out, tn = o_ref.shape
    o_ref[:, pl.ds(0, c_in), :] = x_ref[...].astype(o_ref.dtype)
    o_ref[:, pl.ds(c_in, c_out - c_in), :] = jnp.zeros(
        (bb, c_out - c_in, tn), o_ref.dtype)


# ---------------------------------------------------------------------------
# Wrapper
# ---------------------------------------------------------------------------
def align_forward(x, c_out, params=None):
    """Pallas forward of STGCN `align`: x (B, c_in, H, W) -> (B, c_out, H, W)."""
    B, c_in, H, W = x.shape
    if c_in == c_out:
        return x                                     # identity branch

    N = H * W
    x_flat = x.reshape(B, c_in, N)                   # native dtype, free reshape
    itemsize = x.dtype.itemsize
    bb, tn, vmem_limit = _pick_blocks(B, N, c_in, c_out, itemsize)
    grid = (pl.cdiv(B, bb), pl.cdiv(N, tn))
    compiler_params = pltpu.CompilerParams(
        dimension_semantics=("parallel", "parallel"),
        vmem_limit_bytes=vmem_limit)

    if c_in > c_out:
        # ---- 1x1 conv branch ----
        w, b = params
        w_f = w[..., 0, 0].astype(jnp.float32)          # (c_out, c_in)
        b_f = b.reshape(c_out, 1).astype(jnp.float32)   # (c_out, 1)
        cost = pl.CostEstimate(
            flops=2 * B * c_out * c_in * N,
            transcendentals=0,
            bytes_accessed=(B * c_in * N + B * c_out * N) * itemsize
                           + (c_out * c_in + c_out) * 4)
        out = pl.pallas_call(
            functools.partial(_conv1x1_kernel, bb=bb),
            out_shape=jax.ShapeDtypeStruct((B, c_out, N), x.dtype),
            grid_spec=pltpu.PrefetchScalarGridSpec(
                num_scalar_prefetch=0,
                grid=grid,
                in_specs=[
                    pl.BlockSpec((bb, c_in, tn), lambda i, j: (i, 0, j)),
                    pl.BlockSpec((c_out, c_in), lambda i, j: (0, 0)),
                    pl.BlockSpec((c_out, 1), lambda i, j: (0, 0)),
                ],
                out_specs=pl.BlockSpec((bb, c_out, tn), lambda i, j: (i, 0, j)),
            ),
            compiler_params=compiler_params,
            cost_estimate=cost,
        )(x_flat, w_f, b_f)
        return out.reshape(B, c_out, H, W)

    # ---- zero-pad branch (c_in < c_out) ----
    # TODO(synk): jnp.pad fuses with neighbouring XLA ops at HBM roofline; the
    # Pallas kernel is kept for completeness and now preserves x.dtype.
    cost = pl.CostEstimate(
        flops=0,
        transcendentals=0,
        bytes_accessed=(B * c_in * N + B * c_out * N) * itemsize)
    out = pl.pallas_call(
        functools.partial(_pad_kernel, c_in=c_in),
        out_shape=jax.ShapeDtypeStruct((B, c_out, N), x.dtype),
        grid_spec=pltpu.PrefetchScalarGridSpec(
            num_scalar_prefetch=0,
            grid=grid,
            in_specs=[pl.BlockSpec((bb, c_in, tn), lambda i, j: (i, 0, j))],
            out_specs=pl.BlockSpec((bb, c_out, tn), lambda i, j: (i, 0, j)),
        ),
        compiler_params=compiler_params,
        cost_estimate=cost,
    )(x_flat)
    return out.reshape(B, c_out, H, W)


# ---------------------------------------------------------------------------
# Pure-JAX reference (mirrors the PyTorch forward)
# ---------------------------------------------------------------------------
def ref_align(x, c_out, params=None):
    B, c_in, H, W = x.shape
    if c_in > c_out:
        w, b = params
        return (jnp.einsum('oi,bihw->bohw', w[..., 0, 0], x)
                + b[None, :, None, None])
    if c_in < c_out:
        return jnp.pad(x, ((0, 0), (0, c_out - c_in), (0, 0), (0, 0)))
    return x


if __name__ == "__main__":
    key = jax.random.PRNGKey(0)
    ks = jax.random.split(key, 4)
    B, H, W = 2, 8, 16          # H*W = 128 -> lane-dense blocks

    # --- branch 1: c_in > c_out  (1x1 conv) ---
    c_in, c_out = 8, 4
    x = jax.random.normal(ks[0], (B, c_in, H, W), dtype=jnp.float32)
    w = 0.3 * jax.random.normal(ks[1], (c_out, c_in, 1, 1), dtype=jnp.float32)
    b = 0.1 * jax.random.normal(ks[2], (c_out,), dtype=jnp.float32)
    out = jax.block_until_ready(align_forward(x, c_out, (w, b)))
    ref = jax.block_until_ready(ref_align(x, c_out, (w, b)))
    assert out.shape == (B, c_out, H, W)
    assert jnp.allclose(out, ref, atol=1e-5, rtol=1e-5), (
        f"conv branch max err {jnp.max(jnp.abs(out - ref))}")

    # --- branch 2: c_in < c_out (zero pad) ---
    c_in2, c_out2 = 4, 8
    x2 = jax.random.normal(ks[3], (B, c_in2, H, W), dtype=jnp.float32)
    out2 = jax.block_until_ready(align_forward(x2, c_out2))
    ref2 = jax.block_until_ready(ref_align(x2, c_out2))
    assert out2.shape == (B, c_out2, H, W)
    assert jnp.allclose(out2, ref2), (
        f"pad branch max err {jnp.max(jnp.abs(out2 - ref2))}")

    # --- branch 3: c_in == c_out (identity, no kernel needed) ---
    out3 = align_forward(x2, c_in2)
    assert jnp.array_equal(out3, x2)

    print("KERNEL_OK")
</pallas_src>

<mosaic_0001>
module attributes {stable_mosaic.version = 11 : i64} {
  func.func @_conv1x1_kernel(%arg0: i32, %arg1: i32, %arg2: memref<2x8x128xf32, #tpu.memory_space<vmem>>, %arg3: memref<4x8xf32, #tpu.memory_space<vmem>>, %arg4: memref<4x1xf32, #tpu.memory_space<vmem>>, %arg5: memref<2x4x128xf32, #tpu.memory_space<vmem>>) attributes {dimension_semantics = [#tpu.dimension_semantics<parallel>, #tpu.dimension_semantics<parallel>], iteration_bounds = array<i64: 1, 1>, scalar_prefetch = 0 : i64, scratch_operands = 0 : i64, tpu.core_type = #tpu.core_type<tc>, window_params = [{transform_indices = @transform_0, window_bounds = array<i64: 2, 8, 128>}, {pipeline_mode = #tpu.pipeline_mode<synchronous>, transform_indices = @transform_1, window_bounds = array<i64: 4, 8>}, {pipeline_mode = #tpu.pipeline_mode<synchronous>, transform_indices = @transform_2, window_bounds = array<i64: 4, 1>}, {transform_indices = @transform_3, window_bounds = array<i64: 2, 4, 128>}]} {
    %c0 = arith.constant 0 : index
    %c0_0 = arith.constant 0 : index
    %0 = vector.load %arg3[%c0, %c0_0] : memref<4x8xf32, #tpu.memory_space<vmem>>, vector<4x8xf32>
    %c0_1 = arith.constant 0 : index
    %c0_2 = arith.constant 0 : index
    %1 = vector.load %arg4[%c0_1, %c0_2] : memref<4x1xf32, #tpu.memory_space<vmem>>, vector<4x1xf32>
    %2 = vector.shape_cast %1 : vector<4x1xf32> to vector<4x1xf32>
    %3 = vector.broadcast %2 : vector<4x1xf32> to vector<4x128xf32>
    %c0_i32 = arith.constant 0 : i32
    %4 = arith.index_cast %c0_i32 : i32 to index
    %c0_3 = arith.constant 0 : index
    %c0_4 = arith.constant 0 : index
    %5 = vector.load %arg2[%4, %c0_3, %c0_4] : memref<2x8x128xf32, #tpu.memory_space<vmem>>, vector<1x8x128xf32>
    %6 = vector.shape_cast %5 : vector<1x8x128xf32> to vector<8x128xf32>
    %cst = arith.constant dense<0.000000e+00> : vector<4x128xf32>
    %7 = tpu.matmul %0, %6, %cst {dimension_numbers = #tpu.dot_dimension_numbers<[1], [0], [0], [1], [0, 0, 1, 1], [], []>} : vector<4x8xf32>, vector<8x128xf32>, vector<4x128xf32> -> vector<4x128xf32>
    %8 = arith.addf %7, %3 : vector<4x128xf32>
    %9 = arith.index_cast %c0_i32 : i32 to index
    %c0_5 = arith.constant 0 : index
    %c0_6 = arith.constant 0 : index
    %10 = vector.load %arg5[%9, %c0_5, %c0_6] : memref<2x4x128xf32, #tpu.memory_space<vmem>>, vector<1x4x128xf32>
    %11 = vector.shape_cast %10 : vector<1x4x128xf32> to vector<4x128xf32>
    %12 = vector.shape_cast %8 : vector<4x128xf32> to vector<1x4x128xf32>
    tpu.vector_store %arg5[%9, %c0_5, %c0_6], %12 {strides = array<i32>} : memref<2x4x128xf32, #tpu.memory_space<vmem>>, vector<1x4x128xf32>,
    %c1_i32 = arith.constant 1 : i32
    %13 = arith.index_cast %c1_i32 : i32 to index
    %c0_7 = arith.constant 0 : index
    %c0_8 = arith.constant 0 : index
    %14 = vector.load %arg2[%13, %c0_7, %c0_8] : memref<2x8x128xf32, #tpu.memory_space<vmem>>, vector<1x8x128xf32>
    %15 = vector.shape_cast %14 : vector<1x8x128xf32> to vector<8x128xf32>
    %cst_9 = arith.constant dense<0.000000e+00> : vector<4x128xf32>
    %16 = tpu.matmul %0, %15, %cst_9 {dimension_numbers = #tpu.dot_dimension_numbers<[1], [0], [0], [1], [0, 0, 1, 1], [], []>} : vector<4x8xf32>, vector<8x128xf32>, vector<4x128xf32> -> vector<4x128xf32>
    %17 = arith.addf %16, %3 : vector<4x128xf32>
    %18 = arith.index_cast %c1_i32 : i32 to index
    %c0_10 = arith.constant 0 : index
    %c0_11 = arith.constant 0 : index
    %19 = vector.load %arg5[%18, %c0_10, %c0_11] : memref<2x4x128xf32, #tpu.memory_space<vmem>>, vector<1x4x128xf32>
    %20 = vector.shape_cast %19 : vector<1x4x128xf32> to vector<4x128xf32>
    %21 = vector.shape_cast %17 : vector<4x128xf32> to vector<1x4x128xf32>
    tpu.vector_store %arg5[%18, %c0_10, %c0_11], %21 {strides = array<i32>} : memref<2x4x128xf32, #tpu.memory_space<vmem>>, vector<1x4x128xf32>,
    %c2_i32 = arith.constant 2 : i32
    return
  }
  func.func @transform_0(%arg0: i32, %arg1: i32) -> (i32, i32, i32) {
    %c0_i32 = arith.constant 0 : i32
    %c0_i32_0 = arith.constant 0 : i32
    return %arg0, %c0_i32, %arg1 : i32, i32, i32
  }
  func.func @transform_1(%arg0: i32, %arg1: i32) -> (i32, i32) {
    %c0_i32 = arith.constant 0 : i32
    %c0_i32_0 = arith.constant 0 : i32
    %c0_i32_1 = arith.constant 0 : i32
    return %c0_i32, %c0_i32_0 : i32, i32
  }
  func.func @transform_2(%arg0: i32, %arg1: i32) -> (i32, i32) {
    %c0_i32 = arith.constant 0 : i32
    %c0_i32_0 = arith.constant 0 : i32
    %c0_i32_1 = arith.constant 0 : i32
    return %c0_i32, %c0_i32_0 : i32, i32
  }
  func.func @transform_3(%arg0: i32, %arg1: i32) -> (i32, i32, i32) {
    %c0_i32 = arith.constant 0 : i32
    %c0_i32_0 = arith.constant 0 : i32
    return %arg0, %c0_i32, %arg1 : i32, i32, i32
  }
}

</mosaic_0001>

<llo_original>
// kernel: tpu_custom_call.1
$region0: #{tpu_custom_call.1}
  #allocation0 [shape = 'u32[]', space=smem, size = 0x4, offset = 0x4, fixed_abs, tag = 'smem constant byte address 0x4 - core index']
  #allocation1 [shape = 'u32[144,128]{1,0:T(1,128)}', space=vmem, size = 0x12000, scoped, tag = 'internal scratch']
  %s0 = inlined_call_operand.hbm [shape: f32[2,8,128], index: 0, kind: input, shape index: {}]
  %s1 = inlined_call_operand.vmem [shape: f32[4,8], index: 1, kind: input, shape index: {}]
  %s2 = inlined_call_operand.vmem [shape: f32[4,1], index: 2, kind: input, shape index: {}]
  %s3 = inlined_call_operand.hbm [shape: f32[2,4,128], index: 3, kind: output, shape index: {}]
  %s4 = sld [smem:[#allocation0]]
  $region26: #{tpu_custom_call.1} parent=0
    _
  %s6 = ssub.s32 1, %s4
  %s7 = scalar_select 0, %s6, %s4
  $region1: #{tpu_custom_call.1} parent=0
    #allocation2 [shape = 'u8[8192]{0}', space=vmem, size = 0x2000, scoped, tag = 'input window, operand 0, single buffered']
    #allocation3 [shape = 's32[1]{0}', space=sflag, size = 0x4, scoped, tag = 'scoped memory for tpu_custom_call.1']
    #allocation4 [shape = 's32[1]{0}', space=sflag, size = 0x4, scoped, tag = 'scoped memory for tpu_custom_call.1']
    #allocation5 [shape = 'u8[4096]{0}', space=vmem, size = 0x1000, scoped, tag = 'output window, operand 0, single buffered']
    %8 = vsyncpa [#allocation3], 0
    %9 = vsyncpa [#allocation4], 0
    // Predicated region
    $region2: #{tpu_custom_call.1} parent=1 // pred_check
      _
    $region3: #{tpu_custom_call.1} parent=1 // pred_check_branch
      %11 = sbr.rel (0) target = $region5
    $region4: #{tpu_custom_call.1} parent=1 // pred_region
      %s13 = ssub.s32 256, 256
      %14 = vsyncadd [#allocation3], %s13
      %s15 = sshll.u32 [#allocation2], 4
      %s16 = int_to_ptr.vmem [resolvable:$true] %s15
      %21 = dma.hbm_to_vmem [thread:$0]  %s0, 256, %s16, [#allocation3], 128, 128, 8
    $region5: #{tpu_custom_call.1} parent=1 // pred_fallthru
      _
    // Predicated region
    $region6: #{tpu_custom_call.1} parent=1 // pred_check
      _
    $region7: #{tpu_custom_call.1} parent=1 // pred_check_branch
      %23 = sbr.rel (0) target = $region9
    $region8: #{tpu_custom_call.1} parent=1 // pred_region
      _
    $region9: #{tpu_custom_call.1} parent=1 // pred_fallthru
      _
    // Predicated region
    $region10: #{tpu_custom_call.1} parent=1 // pred_check
      _
    $region11: #{tpu_custom_call.1} parent=1 // pred_check_branch
      %25 = sbr.rel (0) target = $region13
    $region12: #{tpu_custom_call.1} parent=1 // pred_region
      _
    $region13: #{tpu_custom_call.1} parent=1 // pred_fallthru
      _
    // Predicated region
    $region14: #{tpu_custom_call.1} parent=1 // pred_check
      _
    $region15: #{tpu_custom_call.1} parent=1 // pred_check_branch
      %27 = sbr.rel (0) target = $region17
    $region16: #{tpu_custom_call.1} parent=1 // pred_region
      %28 = dma.done [#allocation3], 256
    $region17: #{tpu_custom_call.1} parent=1 // pred_fallthru
      _
    %v29 = vld [vmem:[%s1] sm:$0xf]
    %v30 = vld [vmem:[%s2] sm:$0xf]
    %32 = vset.pattern.permute.xlu0 0
    %33 = vperm.xlu0 %32, %v30
    %v34 = vpop.permute.xlu0 %33
    %v36 = vld [vmem:[#allocation2] sm:$0xff]
    %vm37 = vcmask 64512
    %v39 = vsel %vm37, %v29, 0
    %41 = vmatprep.subr.mxu0 0.0
    %42 = vmatpush1.msra.mxu0 0.0
    %43 = vmatprep.subr.mxu0 0.0
    %44 = vmatpush1.msra.mxu0 0.0
    %45 = vmatprep.subr.mxu0 0.0
    %46 = vmatpush1.msra.mxu0 0.0
    %47 = vmatprep.subr.mxu0 0.0
    %48 = vmatpush1.msra.mxu0 0.0
    %49 = vmatprep.subr.mxu0 0.0
    %50 = vmatpush1.msra.mxu0 0.0
    %51 = vmatprep.subr.mxu0 0.0
    %52 = vmatpush1.msra.mxu0 0.0
    %53 = vmatprep.subr.mxu0 0.0
    %54 = vmatpush1.msra.mxu0 0.0
    %55 = vmatprep.subr.mxu0 0.0
    %56 = vmatpush1.msra.mxu0 0.0
    %57 = vmatprep.subr.mxu0 0.0
    %58 = vmatpush1.msra.mxu0 0.0
    %59 = vmatprep.subr.mxu0 0.0
    %60 = vmatpush1.msra.mxu0 0.0
    %61 = vmatprep.subr.mxu0 0.0
    %62 = vmatpush1.msra.mxu0 0.0
    %63 = vmatprep.subr.mxu0 0.0
    %64 = vmatpush1.msra.mxu0 0.0
    %65 = vmatprep.subr.mxu0 0.0
    %66 = vmatpush1.msra.mxu0 0.0
    %67 = vmatprep.subr.mxu0 0.0
    %68 = vmatpush1.msra.mxu0 0.0
    %69 = vmatprep.subr.mxu0 0.0
    %70 = vmatpush1.msra.mxu0 0.0
    %71 = vmatprep.subr.mxu0 0.0
    %72 = vmatpush1.msra.mxu0 %v36
    %73 = vmatprep.subr.mxu0 0.0
    %74 = vmatpush2.msra.mxu0 0.0
    %75 = vmatprep.subr.mxu0 0.0
    %76 = vmatpush2.msra.mxu0 0.0
    %77 = vmatprep.subr.mxu0 0.0
    %78 = vmatpush2.msra.mxu0 0.0
    %79 = vmatprep.subr.mxu0 0.0
    %80 = vmatpush2.msra.mxu0 0.0
    %81 = vmatprep.subr.mxu0 0.0
    %82 = vmatpush2.msra.mxu0 0.0
    %83 = vmatprep.subr.mxu0 0.0
    %84 = vmatpush2.msra.mxu0 0.0
    %85 = vmatprep.subr.mxu0 0.0
    %86 = vmatpush2.msra.mxu0 0.0
    %87 = vmatprep.subr.mxu0 0.0
    %88 = vmatpush2.msra.mxu0 0.0
    %89 = vmatprep.subr.mxu0 0.0
    %90 = vmatpush2.msra.mxu0 0.0
    %91 = vmatprep.subr.mxu0 0.0
    %92 = vmatpush2.msra.mxu0 0.0
    %93 = vmatprep.subr.mxu0 0.0
    %94 = vmatpush2.msra.mxu0 0.0
    %95 = vmatprep.subr.mxu0 0.0
    %96 = vmatpush2.msra.mxu0 0.0
    %97 = vmatprep.subr.mxu0 0.0
    %98 = vmatpush2.msra.mxu0 0.0
    %99 = vmatprep.subr.mxu0 0.0
    %100 = vmatpush2.msra.mxu0 0.0
    %101 = vmatprep.subr.mxu0 0.0
    %102 = vmatpush2.msra.mxu0 0.0
    %103 = vmatprep.subr.mxu0 0.0
    %104 = vmatpush2.msra.mxu0 0.0
    %105 = vmatprep.mubr.f32.mxu0 0.0
    %106 = vmatmul.mubr.f32.gmra.mxu0 %v39
    %v107 = vpop.f32.mrf.mxu0
    %v108 = vadd.f32 %v34, %v107
    %v109 = vpop.f32.mrf.mxu0
    %110 = vdwg.mxu0
    %111 = vst [vmem:[#allocation5] sm:$0xf] %v108
    %s112 = scalar_lea.vmem [#allocation2], 8
    %v113 = vld [vmem:[%s112] sm:$0xff]
    %114 = vmatprep.subr.mxu0 0.0
    %115 = vmatpush1.msra.mxu0 0.0
    %116 = vmatprep.subr.mxu0 0.0
    %117 = vmatpush1.msra.mxu0 0.0
    %118 = vmatprep.subr.mxu0 0.0
    %119 = vmatpush1.msra.mxu0 0.0
    %120 = vmatprep.subr.mxu0 0.0
    %121 = vmatpush1.msra.mxu0 0.0
    %122 = vmatprep.subr.mxu0 0.0
    %123 = vmatpush1.msra.mxu0 0.0
    %124 = vmatprep.subr.mxu0 0.0
    %125 = vmatpush1.msra.mxu0 0.0
    %126 = vmatprep.subr.mxu0 0.0
    %127 = vmatpush1.msra.mxu0 0.0
    %128 = vmatprep.subr.mxu0 0.0
    %129 = vmatpush1.msra.mxu0 0.0
    %130 = vmatprep.subr.mxu0 0.0
    %131 = vmatpush1.msra.mxu0 0.0
    %132 = vmatprep.subr.mxu0 0.0
    %133 = vmatpush1.msra.mxu0 0.0
    %134 = vmatprep.subr.mxu0 0.0
    %135 = vmatpush1.msra.mxu0 0.0
    %136 = vmatprep.subr.mxu0 0.0
    %137 = vmatpush1.msra.mxu0 0.0
    %138 = vmatprep.subr.mxu0 0.0
    %139 = vmatpush1.msra.mxu0 0.0
    %140 = vmatprep.subr.mxu0 0.0
    %141 = vmatpush1.msra.mxu0 0.0
    %142 = vmatprep.subr.mxu0 0.0
    %143 = vmatpush1.msra.mxu0 0.0
    %144 = vmatprep.subr.mxu0 0.0
    %145 = vmatpush1.msra.mxu0 %v113
    %146 = vmatprep.subr.mxu0 0.0
    %147 = vmatpush2.msra.mxu0 0.0
    %148 = vmatprep.subr.mxu0 0.0
    %149 = vmatpush2.msra.mxu0 0.0
    %150 = vmatprep.subr.mxu0 0.0
    %151 = vmatpush2.msra.mxu0 0.0
    %152 = vmatprep.subr.mxu0 0.0
    %153 = vmatpush2.msra.mxu0 0.0
    %154 = vmatprep.subr.mxu0 0.0
    %155 = vmatpush2.msra.mxu0 0.0
    %156 = vmatprep.subr.mxu0 0.0
    %157 = vmatpush2.msra.mxu0 0.0
    %158 = vmatprep.subr.mxu0 0.0
    %159 = vmatpush2.msra.mxu0 0.0
    %160 = vmatprep.subr.mxu0 0.0
    %161 = vmatpush2.msra.mxu0 0.0
    %162 = vmatprep.subr.mxu0 0.0
    %163 = vmatpush2.msra.mxu0 0.0
    %164 = vmatprep.subr.mxu0 0.0
    %165 = vmatpush2.msra.mxu0 0.0
    %166 = vmatprep.subr.mxu0 0.0
    %167 = vmatpush2.msra.mxu0 0.0
    %168 = vmatprep.subr.mxu0 0.0
    %169 = vmatpush2.msra.mxu0 0.0
    %170 = vmatprep.subr.mxu0 0.0
    %171 = vmatpush2.msra.mxu0 0.0
    %172 = vmatprep.subr.mxu0 0.0
    %173 = vmatpush2.msra.mxu0 0.0
    %174 = vmatprep.subr.mxu0 0.0
    %175 = vmatpush2.msra.mxu0 0.0
    %176 = vmatprep.subr.mxu0 0.0
    %177 = vmatpush2.msra.mxu0 0.0
    %178 = vmatprep.mubr.f32.mxu0 0.0
    %179 = vmatmul.mubr.f32.gmra.mxu0 %v39
    %v180 = vpop.f32.mrf.mxu0
    %v181 = vadd.f32 %v34, %v180
    %v182 = vpop.f32.mrf.mxu0
    %183 = vdwg.mxu0
    %s184 = scalar_lea.vmem [#allocation5], 4
    %185 = vst [vmem:[%s184] sm:$0xf] %v181
    // Predicated region
    $region18: #{tpu_custom_call.1} parent=1 // pred_check
      _
    $region19: #{tpu_custom_call.1} parent=1 // pred_check_branch
      %187 = sbr.rel (0) target = $region21
    $region20: #{tpu_custom_call.1} parent=1 // pred_region
      %s189 = ssub.s32 128, 128
      %190 = vsyncadd [#allocation4], %s189
      %s191 = sshll.u32 [#allocation5], 4
      %s192 = int_to_ptr.vmem [resolvable:$true] %s191
      %197 = dma.vmem_to_hbm [thread:$0]  %s192, 128, %s3, [#allocation4], 64, 64, 4
    $region21: #{tpu_custom_call.1} parent=1 // pred_fallthru
      _
    // Predicated region
    $region22: #{tpu_custom_call.1} parent=1 // pred_check
      _
    $region23: #{tpu_custom_call.1} parent=1 // pred_check_branch
      %199 = sbr.rel (0) target = $region25
    $region24: #{tpu_custom_call.1} parent=1 // pred_region
      %200 = dma.done [#allocation4], 128
    $region25: #{tpu_custom_call.1} parent=1 // pred_fallthru
      _
    %201 = vsyncpa [#allocation3], 1
    %202 = vsyncpa [#allocation4], 1

</llo_original>
